<compile_context>
chip_gen: v7x
topology: tpu7x:2x2x1
jax: 0.10.0
libtpu: 0.0.40
codegen_flags: <defaults>
</compile_context>

<pallas_src>
import jax
import jax.numpy as jnp
from jax.experimental import pallas as pl
from jax.experimental.pallas import tpu as pltpu


def _picked_logprob_kernel(logits_ref, targets_ref, picked_ref):
    # logits_ref: (TILE_N, V) in model dtype; targets_ref: (TILE_N, 1) int32.
    x = logits_ref[...].astype(jnp.float32)                      # cast once per tile
    tgt = targets_ref[...]                                       # (TILE_N, 1)

    m = jnp.max(x, axis=-1, keepdims=True)                       # (TILE_N, 1)
    s = jnp.sum(jnp.exp(x - m), axis=-1, keepdims=True)          # (TILE_N, 1)

    vocab_ids = jax.lax.broadcasted_iota(jnp.int32, x.shape, 1)  # (TILE_N, V)
    t = jnp.sum(jnp.where(vocab_ids == tgt, x, 0.0),
                axis=-1, keepdims=True)                          # (TILE_N, 1)

    # log_softmax(x)[tgt] = x[tgt] - m - log(sum(exp(x - m)))
    picked_ref[...] = t - m - jnp.log(s)


def _choose_tile_n(n, v, itemsize):
    """Pick a row-tile size: sublane aligned, modest VMEM footprint, and (when
    possible) an exact divisor of n so the wrapper never has to pad/copy."""
    row_align = 8 if itemsize >= 4 else (16 if itemsize == 2 else 32)
    per_buf_budget = 8 * 1024 * 1024  # bytes per pipelined logits buffer
    cap = (per_buf_budget // max(1, v * itemsize)) // row_align * row_align
    cap = max(row_align, min(cap, 1024))
    if n <= cap:
        return ((n + row_align - 1) // row_align) * row_align
    t = cap
    while t >= row_align:
        if n % t == 0:
            return t
        t -= row_align
    return cap


def get_perplexity(logits, targets, vocab_size):
    """logits: (B, T, V); targets: (B, T) int. Returns scalar perplexity."""
    B, T, V = logits.shape
    assert V == vocab_size
    N = B * T
    itemsize = jnp.dtype(logits.dtype).itemsize

    tile_n = _choose_tile_n(N, V, itemsize)
    num_tiles = pl.cdiv(N, tile_n)
    padded_n = num_tiles * tile_n

    logits2 = logits.reshape(N, V)                    # keep HBM dtype (no f32 copy)
    targets2 = targets.reshape(N, 1).astype(jnp.int32)
    if padded_n != N:
        logits2 = jnp.pad(logits2, ((0, padded_n - N), (0, 0)))
        targets2 = jnp.pad(targets2, ((0, padded_n - N), (0, 0)))

    cost = pl.CostEstimate(
        flops=6 * N * V,
        transcendentals=N * V,
        bytes_accessed=N * V * itemsize + 2 * N * 4,
    )

    picked = pl.pallas_call(
        _picked_logprob_kernel,
        out_shape=jax.ShapeDtypeStruct((padded_n, 1), jnp.float32),
        grid_spec=pltpu.PrefetchScalarGridSpec(
            num_scalar_prefetch=0,
            grid=(num_tiles,),
            in_specs=[
                pl.BlockSpec((tile_n, V), lambda i: (i, 0)),
                pl.BlockSpec((tile_n, 1), lambda i: (i, 0)),
            ],
            out_specs=pl.BlockSpec((tile_n, 1), lambda i: (i, 0)),
        ),
        compiler_params=pltpu.CompilerParams(
            dimension_semantics=("parallel",),
            vmem_limit_bytes=48 * 1024 * 1024,
        ),
        cost_estimate=cost,
    )(logits2, targets2)

    # Tiny finalization in plain JAX: drop padded rows, mean over real tokens, exp.
    return jnp.exp(-jnp.mean(picked[:N, 0]))


def _reference_perplexity(logits, targets, vocab_size):
    logp = jax.nn.log_softmax(logits.astype(jnp.float32), axis=-1)
    onehot = jax.nn.one_hot(targets, vocab_size, dtype=jnp.float32)
    return jnp.exp(-jnp.sum(logp * onehot, axis=-1).mean())


if __name__ == "__main__":
    key = jax.random.PRNGKey(0)

    cases = [
        # (B, T, V, dtype)  -- small GPT-ish shapes, vocab lane-aligned.
        (2, 8, 128, jnp.float32),
        (2, 8, 128, jnp.bfloat16),   # bf16 HBM path (no wrapper cast)
        (3, 5, 128, jnp.float32),    # N=15: exercises row padding + masking
    ]

    for B, T, V, dt in cases:
        key, k_logits, k_targets = jax.random.split(key, 3)
        logits = jax.random.normal(k_logits, (B, T, V), dtype=jnp.float32).astype(dt)
        targets = jax.random.randint(k_targets, (B, T), 0, V, dtype=jnp.int32)

        ppl = jax.block_until_ready(get_perplexity(logits, targets, V))
        ref = jax.block_until_ready(_reference_perplexity(logits, targets, V))
        assert jnp.allclose(ppl, ref, rtol=1e-4, atol=1e-4), (dt, ppl, ref)

    print("KERNEL_OK")
</pallas_src>

<mosaic_0001>
module attributes {stable_mosaic.version = 11 : i64} {
  func.func @_picked_logprob_kernel(%arg0: i32, %arg1: memref<16x128xf32, #tpu.memory_space<vmem>>, %arg2: memref<16x1xi32, #tpu.memory_space<vmem>>, %arg3: memref<16x1xf32, #tpu.memory_space<vmem>>) attributes {dimension_semantics = [#tpu.dimension_semantics<parallel>], iteration_bounds = array<i64: 1>, scalar_prefetch = 0 : i64, scratch_operands = 0 : i64, tpu.core_type = #tpu.core_type<tc>, window_params = [{transform_indices = @transform_0, window_bounds = array<i64: 16, 128>}, {transform_indices = @transform_1, window_bounds = array<i64: 16, 1>}, {transform_indices = @transform_2, window_bounds = array<i64: 16, 1>}]} {
    %c0 = arith.constant 0 : index
    %c0_0 = arith.constant 0 : index
    %0 = vector.load %arg1[%c0, %c0_0] : memref<16x128xf32, #tpu.memory_space<vmem>>, vector<16x128xf32>
    %c0_1 = arith.constant 0 : index
    %c0_2 = arith.constant 0 : index
    %1 = vector.load %arg2[%c0_1, %c0_2] : memref<16x1xi32, #tpu.memory_space<vmem>>, vector<16x1xi32>
    %cst = arith.constant dense<0xFF800000> : vector<16xf32>
    %2 = vector.multi_reduction <maximumf>, %0, %cst [1] : vector<16x128xf32> to vector<16xf32>
    %3 = vector.shape_cast %2 : vector<16xf32> to vector<16x1xf32>
    %4 = vector.broadcast %3 : vector<16x1xf32> to vector<16x128xf32>
    %5 = arith.subf %0, %4 : vector<16x128xf32>
    %6 = math.exp %5 : vector<16x128xf32>
    %cst_3 = arith.constant dense<0.000000e+00> : vector<16xf32>
    %7 = vector.multi_reduction <add>, %6, %cst_3 [1] : vector<16x128xf32> to vector<16xf32>
    %8 = vector.shape_cast %7 : vector<16xf32> to vector<16x1xf32>
    %9 = tpu.iota {dimensions = array<i32: 1>} : vector<16x128xi32>
    %10 = vector.broadcast %1 : vector<16x1xi32> to vector<16x128xi32>
    %11 = arith.cmpi eq, %9, %10 : vector<16x128xi32>
    %cst_4 = arith.constant 0.000000e+00 : f32
    %12 = vector.broadcast %cst_4 : f32 to vector<16x128xf32>
    %13 = arith.select %11, %0, %12 : vector<16x128xi1>, vector<16x128xf32>
    %cst_5 = arith.constant dense<0.000000e+00> : vector<16xf32>
    %14 = vector.multi_reduction <add>, %13, %cst_5 [1] : vector<16x128xf32> to vector<16xf32>
    %15 = vector.shape_cast %14 : vector<16xf32> to vector<16x1xf32>
    %16 = arith.subf %15, %3 : vector<16x1xf32>
    %17 = math.log %8 : vector<16x1xf32>
    %18 = arith.subf %16, %17 : vector<16x1xf32>
    %c0_6 = arith.constant 0 : index
    %c0_7 = arith.constant 0 : index
    %19 = vector.load %arg3[%c0_6, %c0_7] : memref<16x1xf32, #tpu.memory_space<vmem>>, vector<16x1xf32>
    tpu.vector_store %arg3[%c0_6, %c0_7], %18 {strides = array<i32>} : memref<16x1xf32, #tpu.memory_space<vmem>>, vector<16x1xf32>,
    return
  }
  func.func @transform_0(%arg0: i32) -> (i32, i32) {
    %c0_i32 = arith.constant 0 : i32
    %c0_i32_0 = arith.constant 0 : i32
    return %arg0, %c0_i32 : i32, i32
  }
  func.func @transform_1(%arg0: i32) -> (i32, i32) {
    %c0_i32 = arith.constant 0 : i32
    %c0_i32_0 = arith.constant 0 : i32
    return %arg0, %c0_i32 : i32, i32
  }
  func.func @transform_2(%arg0: i32) -> (i32, i32) {
    %c0_i32 = arith.constant 0 : i32
    %c0_i32_0 = arith.constant 0 : i32
    return %arg0, %c0_i32 : i32, i32
  }
}

</mosaic_0001>

<llo_original>
// kernel: tpu_custom_call.1
$region0: #{tpu_custom_call.1}
  #allocation0 [shape = 'u32[]', space=smem, size = 0x4, offset = 0x4, fixed_abs, tag = 'smem constant byte address 0x4 - core index']
  #allocation1 [shape = 'u32[144,128]{1,0:T(1,128)}', space=vmem, size = 0x12000, scoped, tag = 'internal scratch']
  %s0 = inlined_call_operand.vmem [shape: f32[16,128], index: 0, kind: input, shape index: {}]
  %s1 = inlined_call_operand.vmem [shape: s32[16,1], index: 1, kind: input, shape index: {}]
  %s2 = inlined_call_operand.vmem [shape: f32[16,1], index: 2, kind: output, shape index: {}]
  %s3 = sld [smem:[#allocation0]]
  $region18: #{tpu_custom_call.1} parent=0
    _
  %s5 = ssub.s32 1, %s3
  %s6 = scalar_select 0, %s5, %s3
  // Predicated region
  $region2: #{tpu_custom_call.1} parent=0 // pred_check
    _
  $region3: #{tpu_custom_call.1} parent=0 // pred_check_branch
    %8 = sbr.rel (0) target = $region5
  $region4: #{tpu_custom_call.1} parent=0 // pred_region
    _
  $region5: #{tpu_custom_call.1} parent=0 // pred_fallthru
    _
  // Predicated region
  $region6: #{tpu_custom_call.1} parent=0 // pred_check
    _
  $region7: #{tpu_custom_call.1} parent=0 // pred_check_branch
    %10 = sbr.rel (0) target = $region9
  $region8: #{tpu_custom_call.1} parent=0 // pred_region
    _
  $region9: #{tpu_custom_call.1} parent=0 // pred_fallthru
    _
  %v11 = vld [vmem:[%s0] sm:$0xff]
  %v12 = vld [vmem:[%s0 + $0x8] sm:$0xff]
  %v13 = vld [vmem:[%s1] sm:$0xff]
  %v14 = vld [vmem:[%s1 + $0x8] sm:$0xff]
  %15 = vmax.xlane.f32.xlu0 %v11
  %v16 = vpop.xlane.xlu0 %15
  %17 = vmax.xlane.f32.xlu0 %v12
  %v18 = vpop.xlane.xlu0 %17
  %v19 = vsub.f32 %v11, %v16
  %v20 = vsub.f32 %v12, %v18
  %v21 = vmul.f32 %v19, 1.442695
  %v22 = vpow.pop %v21
  %v23 = vmul.f32 %v20, 1.442695
  %v24 = vpow.pop %v23
  %25 = vadd.xlane.f32.xlu0 %v22
  %v26 = vpop.xlane.xlu0 %25
  %27 = vadd.xlane.f32.xlu0 %v24
  %v28 = vpop.xlane.xlu0 %27
  %v29 = vlaneseq
  %v30 = vand.u32 %v29, 127
  %31 = vset.pattern.permute.xlu0 0
  %32 = vperm.xlu0 %31, %v13
  %v33 = vpop.permute.xlu0 %32
  %34 = vset.pattern.permute.xlu0 0
  %35 = vperm.xlu0 %34, %v14
  %v36 = vpop.permute.xlu0 %35
  %vm37 = vcmp.eq.s32.totalorder %v30, %v33
  %vm38 = vcmp.eq.s32.totalorder %v30, %v36
  %v39 = vsel %vm37, %v11, 0.0
  %v40 = vsel %vm38, %v12, 0.0
  %41 = vadd.xlane.f32.xlu0 %v39
  %v42 = vpop.xlane.xlu0 %41
  %43 = vadd.xlane.f32.xlu0 %v40
  %v44 = vpop.xlane.xlu0 %43
  %v45 = vsub.f32 %v42, %v16
  %v46 = vsub.f32 %v44, %v18
  %v47 = vlog2.pop %v26
  %v48 = vmul.f32 %v47, 0.6931472
  %v49 = vlog2.pop %v28
  %v50 = vmul.f32 %v49, 0.6931472
  %v51 = vsub.f32 %v45, %v48
  %v52 = vsub.f32 %v46, %v50
  %vm53 = vcmask 7168
  %54 = vst.msk [vmem:[%s2] sm:$0xff] %vm53, %v51
  %55 = vst.msk [vmem:[%s2 + $0x8] sm:$0xff] %vm53, %v52
  // Predicated region
  $region10: #{tpu_custom_call.1} parent=0 // pred_check
    _
  $region11: #{tpu_custom_call.1} parent=0 // pred_check_branch
    %57 = sbr.rel (0) target = $region13
  $region12: #{tpu_custom_call.1} parent=0 // pred_region
    _
  $region13: #{tpu_custom_call.1} parent=0 // pred_fallthru
    _
  // Predicated region
  $region14: #{tpu_custom_call.1} parent=0 // pred_check
    _
  $region15: #{tpu_custom_call.1} parent=0 // pred_check_branch
    %59 = sbr.rel (0) target = $region17
  $region16: #{tpu_custom_call.1} parent=0 // pred_region
    _
  $region17: #{tpu_custom_call.1} parent=0 // pred_fallthru
    _

</llo_original>
